<compile_context>
chip_gen: v7x
topology: tpu7x:2x2x1
jax: 0.10.0
libtpu: 0.0.40
codegen_flags: <defaults>
</compile_context>

<pallas_src>
import functools

import jax
import jax.numpy as jnp
from jax import lax
from jax.experimental import pallas as pl
from jax.experimental.pallas import tpu as pltpu


def _round_up(x, m):
    return ((x + m - 1) // m) * m


def _dkd_kernel(s_ref, t_ref, lab_ref, out_ref, *, alpha, beta, inv_T, batch_size):
    i = pl.program_id(0)
    TB, C = s_ref.shape

    # [TB, C] tiles; math in f32 regardless of input dtype.
    s = s_ref[...].astype(jnp.float32)
    t = t_ref[...].astype(jnp.float32)
    if inv_T != 1.0:  # trace-time branch: skip the scale entirely when T == 1
        s = s * inv_T
        t = t * inv_T

    labels = lab_ref[...]                                        # [TB, 1] int32
    cls_ids = lax.broadcasted_iota(jnp.int32, (TB, C), dimension=1)
    gt_b = cls_ids == labels                                     # [TB, C] bool

    # One max + one exp + lane reductions per tensor (no p / logp arrays).
    m_s = jnp.max(s, axis=1, keepdims=True)
    m_t = jnp.max(t, axis=1, keepdims=True)
    e_s = jnp.exp(s - m_s)
    e_t = jnp.exp(t - m_t)

    zsum_s = jnp.sum(e_s, axis=1, keepdims=True)                 # [TB, 1]
    zsum_t = jnp.sum(e_t, axis=1, keepdims=True)
    e_s_gt = jnp.sum(jnp.where(gt_b, e_s, 0.0), axis=1, keepdims=True)
    e_t_gt = jnp.sum(jnp.where(gt_b, e_t, 0.0), axis=1, keepdims=True)

    # Non-gt mass numerators -- computed directly (never 1 - p), so no
    # catastrophic cancellation when the teacher saturates on the gt class.
    s2n = zsum_s - e_s_gt
    t2n = zsum_t - e_t_gt

    tiny = jnp.float32(1e-30)
    log_zs = jnp.log(zsum_s)
    log_zt = jnp.log(zsum_t)
    log_es_gt = jnp.log(jnp.maximum(e_s_gt, tiny))
    log_et_gt = jnp.log(jnp.maximum(e_t_gt, tiny))
    log_s2n = jnp.log(jnp.maximum(s2n, tiny))
    log_t2n = jnp.log(jnp.maximum(t2n, tiny))

    # Exact reciprocals on [TB, 1] vectors: negligible cost, keeps strict
    # numerical parity with the f32 reference (approx vrcp ~2^-12 rel error).
    inv_zt = pl.reciprocal(zsum_t, approx=False)
    inv_t2n = pl.reciprocal(jnp.maximum(t2n, tiny), approx=False)

    # ---- TCKD: KL between the 2-way (gt, other) categorical distributions ----
    tckd_rows = inv_zt * (e_t_gt * (log_et_gt - log_es_gt)
                          + t2n * (log_t2n - log_s2n)) + (log_zs - log_zt)

    # ---- NCKD: KL between softmaxes restricted to the non-gt classes --------
    # log q_t(j) - log q_s(j) == (t(j) - s(j)) + d   for j != gt, with
    # d = (m_s - m_t) + log(s2_num) - log(t2_num)  (log-zsum terms cancel), and
    # q_t(j) == e_t(j) / t2_num, so the row KL collapses to w / t2_num + d.
    diff = t - s
    w = jnp.sum(jnp.where(gt_b, 0.0, e_t * diff), axis=1, keepdims=True)
    d = (m_s - m_t) + (log_s2n - log_t2n)
    nckd_rows = w * inv_t2n + d

    # Ragged final tile: mask invalid rows with a SELECT (not a multiply), so
    # garbage / NaN in padded rows can never propagate to the partial sum.
    row_ids = i * TB + lax.broadcasted_iota(jnp.int32, (TB, 1), dimension=0)
    valid = row_ids < batch_size
    tckd = jnp.sum(jnp.where(valid, tckd_rows, 0.0))
    nckd = jnp.sum(jnp.where(valid, nckd_rows, 0.0))

    # Per-tile partial; T^2 / B scaling is applied in the wrapper.
    partial = alpha * tckd + beta * nckd
    out_ref[...] = jnp.broadcast_to(partial, out_ref.shape)


def _vmem_capacity_bytes():
    try:
        return int(pltpu.get_tpu_info().vmem_capacity_bytes)
    except Exception:
        return 64 * 1024 * 1024  # conservative (v7x-sized) fallback


def _pick_batch_tile(B, C, in_itemsize, vmem_limit_bytes):
    """Largest batch tile (multiple of 8) fitting the post-fusion working set."""
    # 2 inputs x 2 pipeline buffers at the input dtype + ~6 live [TB,C] f32
    # temporaries (s, t, e_s, e_t, diff, e_t*diff) + iota/mask slack.
    bytes_per_row = (2 * 2 * in_itemsize + 7 * 4) * C
    budget = (vmem_limit_bytes * 3) // 4          # headroom for output/scratch
    tb = (budget // max(bytes_per_row, 1) // 8) * 8

    if B < 8:
        return max(int(B), 1)                     # single full-array block

    # >= 2 grid steps for DMA double-buffer overlap, >= 4 for dual-TC v7x.
    if B >= 32:
        target_tiles = 4
    elif B >= 16:
        target_tiles = 2
    else:
        target_tiles = 1
    tb_cap = _round_up(-(-B // target_tiles), 8)
    tb = max(8, min(tb, tb_cap, (B // 8) * 8, 1024))
    return int(tb)


def dkd_loss_pallas(s_logits, t_logits, labels, *, alpha=1.0, beta=1.0, T=1.0,
                    batch_tile=None, cast_inputs_to_bf16=False):
    """Pallas TPU implementation of DKDLoss.forward.

    Args:
      s_logits: [B, C] float student logits (f32 or bf16).
      t_logits: [B, C] float teacher logits.
      labels:   [B]    int class indices.
      cast_inputs_to_bf16: cast inputs to bf16 before the DMA (halves HBM
        traffic; recommended on bandwidth-bound v5e).  Math stays f32.
    Returns:
      scalar f32 loss.
    """
    B, C = s_logits.shape
    labels_2d = labels.reshape(-1, 1).astype(jnp.int32)

    if cast_inputs_to_bf16:
        s_logits = s_logits.astype(jnp.bfloat16)
        t_logits = t_logits.astype(jnp.bfloat16)

    # Lane-dense class axis: pad once to a multiple of 128 with a huge negative
    # fill -> exp underflows to exactly 0, padded classes contribute nothing.
    C_pad = _round_up(C, 128)
    if C_pad != C:
        s_logits = jnp.pad(s_logits, ((0, 0), (0, C_pad - C)),
                           constant_values=-1e30)
        t_logits = jnp.pad(t_logits, ((0, 0), (0, C_pad - C)),
                           constant_values=-1e30)

    # Use the real VMEM capacity (128 MiB on v5e/v6e, 64 MiB on v7x); no 64 MiB cap.
    vmem_limit = (_vmem_capacity_bytes() * 3) // 4
    itemsize = jnp.dtype(s_logits.dtype).itemsize
    if batch_tile is not None:
        TB = int(batch_tile)
    else:
        TB = _pick_batch_tile(B, C_pad, itemsize, vmem_limit)

    # Ragged batches handled in-kernel (row-valid select); no wrapper-side pad
    # of the full [B, C] arrays.
    num_tiles = -(-B // TB)

    kernel = functools.partial(
        _dkd_kernel,
        alpha=float(alpha), beta=float(beta),
        inv_T=1.0 / float(T), batch_size=B)

    partials = pl.pallas_call(
        kernel,
        out_shape=jax.ShapeDtypeStruct((num_tiles, 8, 128), jnp.float32),
        grid=(num_tiles,),
        in_specs=[
            pl.BlockSpec((TB, C_pad), lambda i: (i, 0)),
            pl.BlockSpec((TB, C_pad), lambda i: (i, 0)),
            pl.BlockSpec((TB, 1), lambda i: (i, 0)),
        ],
        out_specs=pl.BlockSpec((1, 8, 128), lambda i: (i, 0, 0)),
        compiler_params=pltpu.CompilerParams(
            dimension_semantics=("parallel",),
            vmem_limit_bytes=int(vmem_limit)),
    )(s_logits, t_logits, labels_2d)

    scale = float(T) * float(T) / B
    return jnp.sum(partials[:, 0, 0]) * scale


def dkd_loss_ref(s_logits, t_logits, labels, alpha=1.0, beta=1.0, T=1.0):
    """Pure-JAX reference matching the PyTorch module's math."""
    B, C = s_logits.shape
    labels = labels.reshape(-1)
    gt = jax.nn.one_hot(labels, C, dtype=jnp.float32)
    other = 1.0 - gt
    s = s_logits.astype(jnp.float32) / T
    t = t_logits.astype(jnp.float32) / T
    s_pred = jax.nn.softmax(s, axis=1)
    t_pred = jax.nn.softmax(t, axis=1)
    s_cat = jnp.concatenate([jnp.sum(s_pred * gt, 1, keepdims=True),
                             jnp.sum(s_pred * other, 1, keepdims=True)], axis=1)
    t_cat = jnp.concatenate([jnp.sum(t_pred * gt, 1, keepdims=True),
                             jnp.sum(t_pred * other, 1, keepdims=True)], axis=1)
    tckd = jnp.sum(t_cat * (jnp.log(t_cat) - jnp.log(s_cat))) * T ** 2 / B
    t_p2 = jax.nn.softmax(t - 1000.0 * gt, axis=1)
    s_lp2 = jax.nn.log_softmax(s - 1000.0 * gt, axis=1)
    kl = jnp.where(t_p2 > 0, t_p2 * (jnp.log(t_p2) - s_lp2), 0.0)
    nckd = jnp.sum(kl) * T ** 2 / B
    return alpha * tckd + beta * nckd


if __name__ == "__main__":
    key = jax.random.PRNGKey(0)
    k1, k2, k3, k4, k5, k6, k7, k8, k9 = jax.random.split(key, 9)

    # Case 1: B=16, C=128, TB=8 -> 2-tile grid (multi-tile partials, T=1 path).
    B, C = 16, 128
    s_logits = jax.random.normal(k1, (B, C), dtype=jnp.float32)
    t_logits = jax.random.normal(k2, (B, C), dtype=jnp.float32)
    labels = jax.random.randint(k3, (B,), 0, C, dtype=jnp.int32)
    loss = jax.block_until_ready(
        dkd_loss_pallas(s_logits, t_logits, labels, alpha=1.0, beta=1.0, T=1.0,
                        batch_tile=8))
    ref = dkd_loss_ref(s_logits, t_logits, labels, alpha=1.0, beta=1.0, T=1.0)
    assert jnp.allclose(loss, ref, rtol=2e-4, atol=1e-6), (loss, ref)

    # Case 2: ragged batch (B=12, no wrapper pad) + T=2, alpha/beta != 1.
    B2 = 12
    s2 = jax.random.normal(k4, (B2, C), dtype=jnp.float32)
    t2 = jax.random.normal(k5, (B2, C), dtype=jnp.float32)
    lab2 = jax.random.randint(k6, (B2,), 0, C, dtype=jnp.int32)
    loss2 = jax.block_until_ready(
        dkd_loss_pallas(s2, t2, lab2, alpha=0.5, beta=2.0, T=2.0, batch_tile=8))
    ref2 = dkd_loss_ref(s2, t2, lab2, alpha=0.5, beta=2.0, T=2.0)
    assert jnp.allclose(loss2, ref2, rtol=2e-4, atol=1e-6), (loss2, ref2)

    # Case 3: C=100 (class-axis padding to 128), auto tile, bf16 input DMA.
    B3, C3 = 8, 100
    s3 = jax.random.normal(k7, (B3, C3), dtype=jnp.float32)
    t3 = jax.random.normal(k8, (B3, C3), dtype=jnp.float32)
    lab3 = jax.random.randint(k9, (B3,), 0, C3, dtype=jnp.int32)
    loss3 = jax.block_until_ready(
        dkd_loss_pallas(s3, t3, lab3, alpha=1.0, beta=1.0, T=1.0,
                        cast_inputs_to_bf16=True))
    ref3 = dkd_loss_ref(s3.astype(jnp.bfloat16), t3.astype(jnp.bfloat16), lab3,
                        alpha=1.0, beta=1.0, T=1.0)
    assert jnp.allclose(loss3, ref3, rtol=2e-4, atol=1e-6), (loss3, ref3)

    print("KERNEL_OK")
</pallas_src>

<mosaic_0001>
module attributes {stable_mosaic.version = 11 : i64} {
  func.func @_dkd_kernel(%arg0: i32, %arg1: memref<8x128xf32, #tpu.memory_space<vmem>>, %arg2: memref<8x128xf32, #tpu.memory_space<vmem>>, %arg3: memref<8x1xi32, #tpu.memory_space<vmem>>, %arg4: memref<1x8x128xf32, #tpu.memory_space<vmem>>) attributes {dimension_semantics = [#tpu.dimension_semantics<parallel>], iteration_bounds = array<i64: 2>, scalar_prefetch = 0 : i64, scratch_operands = 0 : i64, tpu.core_type = #tpu.core_type<tc>, window_params = [{transform_indices = @transform_0, window_bounds = array<i64: 8, 128>}, {transform_indices = @transform_1, window_bounds = array<i64: 8, 128>}, {transform_indices = @transform_2, window_bounds = array<i64: 8, 1>}, {transform_indices = @transform_3, window_bounds = array<i64: 1, 8, 128>}]} {
    %c0 = arith.constant 0 : index
    %c0_0 = arith.constant 0 : index
    %0 = vector.load %arg1[%c0, %c0_0] : memref<8x128xf32, #tpu.memory_space<vmem>>, vector<8x128xf32>
    %c0_1 = arith.constant 0 : index
    %c0_2 = arith.constant 0 : index
    %1 = vector.load %arg2[%c0_1, %c0_2] : memref<8x128xf32, #tpu.memory_space<vmem>>, vector<8x128xf32>
    %c0_3 = arith.constant 0 : index
    %c0_4 = arith.constant 0 : index
    %2 = vector.load %arg3[%c0_3, %c0_4] : memref<8x1xi32, #tpu.memory_space<vmem>>, vector<8x1xi32>
    %3 = tpu.iota {dimensions = array<i32: 1>} : vector<8x128xi32>
    %4 = vector.broadcast %2 : vector<8x1xi32> to vector<8x128xi32>
    %5 = arith.cmpi eq, %3, %4 : vector<8x128xi32>
    %cst = arith.constant dense<0xFF800000> : vector<8xf32>
    %6 = vector.multi_reduction <maximumf>, %0, %cst [1] : vector<8x128xf32> to vector<8xf32>
    %7 = vector.shape_cast %6 : vector<8xf32> to vector<8x1xf32>
    %cst_5 = arith.constant dense<0xFF800000> : vector<8xf32>
    %8 = vector.multi_reduction <maximumf>, %1, %cst_5 [1] : vector<8x128xf32> to vector<8xf32>
    %9 = vector.shape_cast %8 : vector<8xf32> to vector<8x1xf32>
    %10 = vector.broadcast %7 : vector<8x1xf32> to vector<8x128xf32>
    %11 = arith.subf %0, %10 : vector<8x128xf32>
    %12 = math.exp %11 : vector<8x128xf32>
    %13 = vector.broadcast %9 : vector<8x1xf32> to vector<8x128xf32>
    %14 = arith.subf %1, %13 : vector<8x128xf32>
    %15 = math.exp %14 : vector<8x128xf32>
    %cst_6 = arith.constant dense<0.000000e+00> : vector<8xf32>
    %16 = vector.multi_reduction <add>, %12, %cst_6 [1] : vector<8x128xf32> to vector<8xf32>
    %17 = vector.shape_cast %16 : vector<8xf32> to vector<8x1xf32>
    %cst_7 = arith.constant dense<0.000000e+00> : vector<8xf32>
    %18 = vector.multi_reduction <add>, %15, %cst_7 [1] : vector<8x128xf32> to vector<8xf32>
    %19 = vector.shape_cast %18 : vector<8xf32> to vector<8x1xf32>
    %cst_8 = arith.constant 0.000000e+00 : f32
    %20 = vector.broadcast %cst_8 : f32 to vector<8x128xf32>
    %21 = arith.select %5, %12, %20 : vector<8x128xi1>, vector<8x128xf32>
    %cst_9 = arith.constant dense<0.000000e+00> : vector<8xf32>
    %22 = vector.multi_reduction <add>, %21, %cst_9 [1] : vector<8x128xf32> to vector<8xf32>
    %23 = vector.shape_cast %22 : vector<8xf32> to vector<8x1xf32>
    %cst_10 = arith.constant 0.000000e+00 : f32
    %24 = vector.broadcast %cst_10 : f32 to vector<8x128xf32>
    %25 = arith.select %5, %15, %24 : vector<8x128xi1>, vector<8x128xf32>
    %cst_11 = arith.constant dense<0.000000e+00> : vector<8xf32>
    %26 = vector.multi_reduction <add>, %25, %cst_11 [1] : vector<8x128xf32> to vector<8xf32>
    %27 = vector.shape_cast %26 : vector<8xf32> to vector<8x1xf32>
    %28 = arith.subf %17, %23 : vector<8x1xf32>
    %29 = arith.subf %19, %27 : vector<8x1xf32>
    %30 = math.log %17 : vector<8x1xf32>
    %31 = math.log %19 : vector<8x1xf32>
    %cst_12 = arith.constant 1.000000e-30 : f32
    %32 = vector.broadcast %cst_12 : f32 to vector<8x1xf32>
    %33 = arith.maximumf %23, %32 : vector<8x1xf32>
    %34 = math.log %33 : vector<8x1xf32>
    %cst_13 = arith.constant 1.000000e-30 : f32
    %35 = vector.broadcast %cst_13 : f32 to vector<8x1xf32>
    %36 = arith.maximumf %27, %35 : vector<8x1xf32>
    %37 = math.log %36 : vector<8x1xf32>
    %cst_14 = arith.constant 1.000000e-30 : f32
    %38 = vector.broadcast %cst_14 : f32 to vector<8x1xf32>
    %39 = arith.maximumf %28, %38 : vector<8x1xf32>
    %40 = math.log %39 : vector<8x1xf32>
    %cst_15 = arith.constant 1.000000e-30 : f32
    %41 = vector.broadcast %cst_15 : f32 to vector<8x1xf32>
    %42 = arith.maximumf %29, %41 : vector<8x1xf32>
    %43 = math.log %42 : vector<8x1xf32>
    %44 = tpu.reciprocal %19 : vector<8x1xf32> -> vector<8x1xf32>
    %cst_16 = arith.constant 1.000000e-30 : f32
    %45 = vector.broadcast %cst_16 : f32 to vector<8x1xf32>
    %46 = arith.maximumf %29, %45 : vector<8x1xf32>
    %47 = tpu.reciprocal %46 : vector<8x1xf32> -> vector<8x1xf32>
    %48 = arith.subf %37, %34 : vector<8x1xf32>
    %49 = arith.mulf %27, %48 : vector<8x1xf32>
    %50 = arith.subf %43, %40 : vector<8x1xf32>
    %51 = arith.mulf %29, %50 : vector<8x1xf32>
    %52 = arith.addf %49, %51 : vector<8x1xf32>
    %53 = arith.mulf %44, %52 : vector<8x1xf32>
    %54 = arith.subf %30, %31 : vector<8x1xf32>
    %55 = arith.addf %53, %54 : vector<8x1xf32>
    %56 = arith.subf %1, %0 : vector<8x128xf32>
    %57 = arith.mulf %15, %56 : vector<8x128xf32>
    %cst_17 = arith.constant 0.000000e+00 : f32
    %58 = vector.broadcast %cst_17 : f32 to vector<8x128xf32>
    %59 = arith.select %5, %58, %57 : vector<8x128xi1>, vector<8x128xf32>
    %cst_18 = arith.constant dense<0.000000e+00> : vector<8xf32>
    %60 = vector.multi_reduction <add>, %59, %cst_18 [1] : vector<8x128xf32> to vector<8xf32>
    %61 = vector.shape_cast %60 : vector<8xf32> to vector<8x1xf32>
    %62 = arith.subf %7, %9 : vector<8x1xf32>
    %63 = arith.subf %40, %43 : vector<8x1xf32>
    %64 = arith.addf %62, %63 : vector<8x1xf32>
    %65 = arith.mulf %61, %47 : vector<8x1xf32>
    %66 = arith.addf %65, %64 : vector<8x1xf32>
    %c8_i32 = arith.constant 8 : i32
    %67 = arith.muli %arg0, %c8_i32 : i32
    %68 = tpu.iota {dimensions = array<i32: 0>} : vector<8x1xi32>
    %69 = vector.broadcast %67 : i32 to vector<8x1xi32>
    %70 = arith.addi %69, %68 : vector<8x1xi32>
    %c16_i32 = arith.constant 16 : i32
    %71 = vector.broadcast %c16_i32 : i32 to vector<8x1xi32>
    %72 = arith.cmpi slt, %70, %71 : vector<8x1xi32>
    %cst_19 = arith.constant 0.000000e+00 : f32
    %73 = vector.broadcast %cst_19 : f32 to vector<8x1xf32>
    %74 = arith.select %72, %55, %73 : vector<8x1xi1>, vector<8x1xf32>
    %75 = vector.shape_cast %74 : vector<8x1xf32> to vector<1x8x1xf32>
    %cst_20 = arith.constant dense<0.000000e+00> : vector<1xf32>
    %76 = vector.multi_reduction <add>, %75, %cst_20 [1, 2] : vector<1x8x1xf32> to vector<1xf32>
    %77 = vector.shape_cast %76 : vector<1xf32> to vector<1x1x1xf32>
    %78 = vector.extract %77[0, 0, 0] : f32 from vector<1x1x1xf32>
    %cst_21 = arith.constant 0.000000e+00 : f32
    %79 = vector.broadcast %cst_21 : f32 to vector<8x1xf32>
    %80 = arith.select %72, %66, %79 : vector<8x1xi1>, vector<8x1xf32>
    %81 = vector.shape_cast %80 : vector<8x1xf32> to vector<1x8x1xf32>
    %cst_22 = arith.constant dense<0.000000e+00> : vector<1xf32>
    %82 = vector.multi_reduction <add>, %81, %cst_22 [1, 2] : vector<1x8x1xf32> to vector<1xf32>
    %83 = vector.shape_cast %82 : vector<1xf32> to vector<1x1x1xf32>
    %84 = vector.extract %83[0, 0, 0] : f32 from vector<1x1x1xf32>
    %cst_23 = arith.constant 1.000000e+00 : f32
    %85 = arith.mulf %cst_23, %78 : f32
    %cst_24 = arith.constant 1.000000e+00 : f32
    %86 = arith.mulf %cst_24, %84 : f32
    %87 = arith.addf %85, %86 : f32
    %88 = vector.broadcast %87 : f32 to vector<1x8x128xf32>
    %c0_25 = arith.constant 0 : index
    %c0_26 = arith.constant 0 : index
    %c0_27 = arith.constant 0 : index
    %89 = vector.load %arg4[%c0_25, %c0_26, %c0_27] : memref<1x8x128xf32, #tpu.memory_space<vmem>>, vector<1x8x128xf32>
    tpu.vector_store %arg4[%c0_25, %c0_26, %c0_27], %88 {strides = array<i32>} : memref<1x8x128xf32, #tpu.memory_space<vmem>>, vector<1x8x128xf32>,
    return
  }
  func.func @transform_0(%arg0: i32) -> (i32, i32) {
    %c0_i32 = arith.constant 0 : i32
    %c0_i32_0 = arith.constant 0 : i32
    return %arg0, %c0_i32 : i32, i32
  }
  func.func @transform_1(%arg0: i32) -> (i32, i32) {
    %c0_i32 = arith.constant 0 : i32
    %c0_i32_0 = arith.constant 0 : i32
    return %arg0, %c0_i32 : i32, i32
  }
  func.func @transform_2(%arg0: i32) -> (i32, i32) {
    %c0_i32 = arith.constant 0 : i32
    %c0_i32_0 = arith.constant 0 : i32
    return %arg0, %c0_i32 : i32, i32
  }
  func.func @transform_3(%arg0: i32) -> (i32, i32, i32) {
    %c0_i32 = arith.constant 0 : i32
    %c0_i32_0 = arith.constant 0 : i32
    %c0_i32_1 = arith.constant 0 : i32
    return %arg0, %c0_i32, %c0_i32_0 : i32, i32, i32
  }
}

</mosaic_0001>

<llo_original>
// kernel: tpu_custom_call.1
$region0: #{tpu_custom_call.1}
  #allocation0 [shape = 'u32[]', space=smem, size = 0x4, offset = 0x4, fixed_abs, tag = 'smem constant byte address 0x4 - core index']
  #allocation1 [shape = 'u32[144,128]{1,0:T(1,128)}', space=vmem, size = 0x12000, scoped, tag = 'internal scratch']
  %s0 = inlined_call_operand.vmem [shape: f32[16,128], index: 0, kind: input, shape index: {}]
  %s1 = inlined_call_operand.hbm [shape: f32[16,128], index: 1, kind: input, shape index: {}]
  %s2 = inlined_call_operand.vmem [shape: s32[16,1], index: 2, kind: input, shape index: {}]
  %s3 = inlined_call_operand.hbm [shape: f32[2,8,128], index: 3, kind: output, shape index: {}]
  %s4 = sld [smem:[#allocation0]]
  $region49: #{tpu_custom_call.1} parent=0
    _
  %s6 = ssub.s32 1, %s4
  %s7 = scalar_select 0, %s6, %s4
  $region1: #{tpu_custom_call.1} parent=0
    #allocation2 [shape = 'u8[8192]{0}', space=vmem, size = 0x2000, scoped, tag = 'input window, operand 1']
    #allocation3 [shape = 's32[2]{0}', space=sflag, size = 0x8, scoped, tag = 'scoped memory for tpu_custom_call.1']
    #allocation4 [shape = 's32[2]{0}', space=sflag, size = 0x8, scoped, tag = 'scoped memory for tpu_custom_call.1']
    #allocation5 [shape = 'u8[8192]{0}', space=vmem, size = 0x2000, scoped, tag = 'output window, operand 0']
    %8 = vsyncpa [#allocation3], 0
    %s9 = scalar_lea.sflag [#allocation3], 1
    %10 = vsyncpa %s9, 0
    %11 = vsyncpa [#allocation4], 0
    %s12 = scalar_lea.sflag [#allocation4], 1
    %13 = vsyncpa %s12, 0
    loop: start=0, step=1, limit=4
    $region2: #{tpu_custom_call.1} parent=1 // loop_pre_header
      _
    $region3: #{tpu_custom_call.1} parent=1 // loop_header
      %s15 = sphi 0, %s19
      %p16 = scmp.ge.s32.totalorder %s15, 4
      %s25 = sphi 0, %s27
      %s28 = sphi 0, %s25
      %s29 = sphi 0, %s28
      %s45 = sphi 0, %s29
      %s51 = sphi 0, %s53
      %s54 = sphi 0, %s51
      %s55 = sphi 0, %s54
      %s71 = sphi 0, %s55
      %s77 = sphi 0, %s79
      %s80 = sphi 0, %s77
      %s81 = sphi 0, %s80
      %s97 = sphi 0, %s81
      %s103 = sphi 0, %s105
      %s106 = sphi 0, %s103
      %s107 = sphi 0, %s106
      %s123 = sphi 0, %s107
    $region4: #{tpu_custom_call.1} parent=1 // loop_header_branch
      %18 = sbr.rel (%p16) target = $region8
    $region5: #{tpu_custom_call.1} parent=1 // loop_body
      %s20 = ssub.s32 %s15, 1
      %s21 = ssub.s32 %s15, 2
      %s22 = sadd.s32 %s15, 1
      %s23 = ssub.s32 %s15, %s22
      %p24 = scmp.eq.s32.totalorder %s23, 0
      %s26 = sadd.s32 %s25, 1
      %s27 = scalar_select %p24, %s25, %s26
      %p30 = pneg %p24
      %p31 = scmp.eq.s32.totalorder %s15, 1
      %p32 = por %p30, %p31
      %p33 = scmp.ne.s32.totalorder %s25, %s28
      %p34 = scmp.eq.s32.totalorder %s15, 0
      %p35 = por %p33, %p34
      %p36 = scmp.ne.s32.totalorder %s25, %s28
      %p37 = scmp.eq.s32.totalorder %s20, 1
      %p38 = por %p36, %p37
      %p39 = scmp.ne.s32.totalorder %s28, %s29
      %p40 = scmp.eq.s32.totalorder %s20, 0
      %p41 = por %p39, %p40
      %p42 = scmp.ne.s32.totalorder %s28, %s29
      %p43 = scmp.eq.s32.totalorder %s21, 1
      %p44 = por %p42, %p43
      %p46 = scmp.ne.s32.totalorder %s29, %s45
      %p47 = scmp.eq.s32.totalorder %s21, 0
      %p48 = por %p46, %p47
      %s49 = ssub.s32 %s15, %s22
      %p50 = scmp.eq.s32.totalorder %s49, 0
      %s52 = sadd.s32 %s51, 1
      %s53 = scalar_select %p50, %s51, %s52
      %p56 = pneg %p50
      %p57 = scmp.eq.s32.totalorder %s15, 1
      %p58 = por %p56, %p57
      %p59 = scmp.ne.s32.totalorder %s51, %s54
      %p60 = scmp.eq.s32.totalorder %s15, 0
      %p61 = por %p59, %p60
      %p62 = scmp.ne.s32.totalorder %s51, %s54
      %p63 = scmp.eq.s32.totalorder %s20, 1
      %p64 = por %p62, %p63
      %p65 = scmp.ne.s32.totalorder %s54, %s55
      %p66 = scmp.eq.s32.totalorder %s20, 0
      %p67 = por %p65, %p66
      %p68 = scmp.ne.s32.totalorder %s54, %s55
      %p69 = scmp.eq.s32.totalorder %s21, 1
      %p70 = por %p68, %p69
      %p72 = scmp.ne.s32.totalorder %s55, %s71
      %p73 = scmp.eq.s32.totalorder %s21, 0
      %p74 = por %p72, %p73
      %s75 = ssub.s32 %s15, %s22
      %p76 = scmp.eq.s32.totalorder %s75, 0
      %s78 = sadd.s32 %s77, 1
      %s79 = scalar_select %p76, %s77, %s78
      %p82 = pneg %p76
      %p83 = scmp.eq.s32.totalorder %s15, 1
      %p84 = por %p82, %p83
      %p85 = scmp.ne.s32.totalorder %s77, %s80
      %p86 = scmp.eq.s32.totalorder %s15, 0
      %p87 = por %p85, %p86
      %p88 = scmp.ne.s32.totalorder %s77, %s80
      %p89 = scmp.eq.s32.totalorder %s20, 1
      %p90 = por %p88, %p89
      %p91 = scmp.ne.s32.totalorder %s80, %s81
      %p92 = scmp.eq.s32.totalorder %s20, 0
      %p93 = por %p91, %p92
      %p94 = scmp.ne.s32.totalorder %s80, %s81
      %p95 = scmp.eq.s32.totalorder %s21, 1
      %p96 = por %p94, %p95
      %p98 = scmp.ne.s32.totalorder %s81, %s97
      %p99 = scmp.eq.s32.totalorder %s21, 0
      %p100 = por %p98, %p99
      %s101 = ssub.s32 %s15, %s22
      %p102 = scmp.eq.s32.totalorder %s101, 0
      %s104 = sadd.s32 %s103, 1
      %s105 = scalar_select %p102, %s103, %s104
      %p108 = pneg %p102
      %p109 = scmp.eq.s32.totalorder %s15, 1
      %p110 = por %p108, %p109
      %p111 = scmp.ne.s32.totalorder %s103, %s106
      %p112 = scmp.eq.s32.totalorder %s15, 0
      %p113 = por %p111, %p112
      %p114 = scmp.ne.s32.totalorder %s103, %s106
      %p115 = scmp.eq.s32.totalorder %s20, 1
      %p116 = por %p114, %p115
      %p117 = scmp.ne.s32.totalorder %s106, %s107
      %p118 = scmp.eq.s32.totalorder %s20, 0
      %p119 = por %p117, %p118
      %p120 = scmp.ne.s32.totalorder %s106, %s107
      %p121 = scmp.eq.s32.totalorder %s21, 1
      %p122 = por %p120, %p121
      %p124 = scmp.ne.s32.totalorder %s107, %s123
      %p125 = scmp.eq.s32.totalorder %s21, 0
      %p126 = por %p124, %p125
      %p127 = scmp.le.s32.totalorder 1, %s15
      %p128 = scmp.lt.s32.totalorder %s15, 3
      %p129 = pnand %p127, %p128
      %p130 = pneg %p129
      // Predicated region
      $region9: #{tpu_custom_call.1} parent=5 // pred_check
        _
      $region10: #{tpu_custom_call.1} parent=5 // pred_check_branch
        %132 = sbr.rel (%p129) target = $region12
      $region11: #{tpu_custom_call.1} parent=5 // pred_region
        %s133 = ssub.s32 %s15, 1
      $region12: #{tpu_custom_call.1} parent=5 // pred_fallthru
        _
      %p134 = scmp.lt.s32.totalorder %s15, 2
      // Predicated region
      $region13: #{tpu_custom_call.1} parent=5 // pred_check
        %p135 = pneg %p134
      $region14: #{tpu_custom_call.1} parent=5 // pred_check_branch
        %137 = sbr.rel (%p135) target = $region16
      $region15: #{tpu_custom_call.1} parent=5 // pred_region
        // Predicated region
        $region17: #{tpu_custom_call.1} parent=15 // pred_check
          %p138 = pneg %p35
        $region18: #{tpu_custom_call.1} parent=15 // pred_check_branch
          %140 = sbr.rel (%p138) target = $region20
        $region19: #{tpu_custom_call.1} parent=15 // pred_region
          %p141 = scmp.lt.s32.totalorder %s15, 1
          %s142 = scalar_select %p141, %s15, 1
          %s143 = smul.addr %s142, 8
          %s144 = scalar_lea.vmem %s0, %s143
        $region20: #{tpu_custom_call.1} parent=15 // pred_fallthru
          _
        // Predicated region
        $region21: #{tpu_custom_call.1} parent=15 // pred_check
          %p145 = pneg %p61
        $region22: #{tpu_custom_call.1} parent=15 // pred_check_branch
          %147 = sbr.rel (%p145) target = $region24
        $region23: #{tpu_custom_call.1} parent=15 // pred_region
          %s148 = sand.u32 %s51, 1
          %s149 = scalar_lea.sflag [#allocation3], %s148
          %s150 = sand.u32 %s51, 1
          %s151 = smul.addr %s150, 8
          %s152 = scalar_lea.vmem [#allocation2], %s151
          %s154 = ssub.s32 128, 128
          %155 = vsyncadd %s149, %s154
          %s156 = smul.addr %s15, 128
          %s157 = scalar_lea.hbm %s1, %s156
          %s159 = sshll.u32 %s152, 4
          %s160 = int_to_ptr.vmem [resolvable:$true] %s159
          %162 = dma.hbm_to_vmem [thread:$0]  %s157, 128, %s160, %s149
        $region24: #{tpu_custom_call.1} parent=15 // pred_fallthru
          _
        // Predicated region
        $region25: #{tpu_custom_call.1} parent=15 // pred_check
          %p163 = pneg %p87
        $region26: #{tpu_custom_call.1} parent=15 // pred_check_branch
          %165 = sbr.rel (%p163) target = $region28
        $region27: #{tpu_custom_call.1} parent=15 // pred_region
          %p166 = scmp.lt.s32.totalorder %s15, 1
          %s167 = scalar_select %p166, %s15, 1
          %s168 = smul.addr %s167, 8
          %s169 = scalar_lea.vmem %s2, %s168
        $region28: #{tpu_custom_call.1} parent=15 // pred_fallthru
          _
      $region16: #{tpu_custom_call.1} parent=5 // pred_fallthru
        _
      %p170 = scmp.le.s32.totalorder 1, %s15
      %p171 = scmp.lt.s32.totalorder %s15, 3
      %p172 = pnand %p170, %p171
      %p173 = pneg %p172
      // Predicated region
      $region29: #{tpu_custom_call.1} parent=5 // pred_check
        _
      $region30: #{tpu_custom_call.1} parent=5 // pred_check_branch
        %175 = sbr.rel (%p172) target = $region32
      $region31: #{tpu_custom_call.1} parent=5 // pred_region
        %s176 = ssub.s32 %s15, 1
        %s177 = sand.u32 %s54, 1
        %s178 = scalar_lea.sflag [#allocation3], %s177
        %s179 = sand.u32 %s54, 1
        %s180 = smul.addr %s179, 8
        %s181 = scalar_lea.vmem [#allocation2], %s180
        // Predicated region
        $region33: #{tpu_custom_call.1} parent=31 // pred_check
          %p182 = pneg %p67
        $region34: #{tpu_custom_call.1} parent=31 // pred_check_branch
          %184 = sbr.rel (%p182) target = $region36
        $region35: #{tpu_custom_call.1} parent=31 // pred_region
          %185 = dma.done %s178, 128
        $region36: #{tpu_custom_call.1} parent=31 // pred_fallthru
          _
        %p186 = scmp.lt.s32.totalorder %s20, 1
        %s187 = scalar_select %p186, %s20, 1
        %s188 = smul.addr %s187, 8
        %s189 = scalar_lea.vmem %s0, %s188
        %p190 = pneg %p41
        %p191 = pneg %p38
        %s192 = sand.u32 %s54, 1
        %s193 = scalar_lea.sflag [#allocation3], %s192
        %s194 = sand.u32 %s54, 1
        %s195 = smul.addr %s194, 8
        %s196 = scalar_lea.vmem [#allocation2], %s195
        %p197 = pneg %p67
        %p198 = pneg %p64
        %p199 = scmp.lt.s32.totalorder %s20, 1
        %s200 = scalar_select %p199, %s20, 1
        %s201 = smul.addr %s200, 8
        %s202 = scalar_lea.vmem %s2, %s201
        %p203 = pneg %p93
        %p204 = pneg %p90
        %p205 = pneg %p119
        %p206 = pneg %p116
        %s207 = sand.u32 %s106, 1
        %s208 = scalar_lea.sflag [#allocation4], %s207
        %s209 = sand.u32 %s106, 1
        %s210 = smul.addr %s209, 8
        %s211 = scalar_lea.vmem [#allocation5], %s210
        %p212 = scmp.lt.s32.totalorder %s20, 1
        %s213 = scalar_select %p212, %s20, 1
        %s214 = smul.addr %s213, 8
        %s215 = scalar_lea.vmem %s0, %s214
        %p216 = scmp.lt.s32.totalorder %s20, 1
        %s217 = scalar_select %p216, %s20, 1
        %s218 = smul.addr %s217, 8
        %s219 = scalar_lea.vmem %s2, %s218
        %v220 = vld [vmem:[%s215] sm:$0xff]
        %v221 = vld [vmem:[%s181] sm:$0xff]
        %v222 = vld [vmem:[%s219] sm:$0xff]
        %v223 = vlaneseq
        %v224 = vand.u32 %v223, 127
        %225 = vset.pattern.permute.xlu0 0
        %226 = vperm.xlu0 %225, %v222
        %v227 = vpop.permute.xlu0 %226
        %vm228 = vcmp.eq.s32.totalorder %v224, %v227
        %229 = vmax.xlane.f32.xlu0 %v220
        %v230 = vpop.xlane.xlu0 %229
        %231 = vmax.xlane.f32.xlu0 %v221
        %v232 = vpop.xlane.xlu0 %231
        %v233 = vsub.f32 %v220, %v230
        %v234 = vmul.f32 %v233, 1.442695
        %v235 = vpow.pop %v234
        %v236 = vsub.f32 %v221, %v232
        %v237 = vmul.f32 %v236, 1.442695
        %v238 = vpow.pop %v237
        %239 = vadd.xlane.f32.xlu0 %v235
        %v240 = vpop.xlane.xlu0 %239
        %241 = vadd.xlane.f32.xlu0 %v238
        %v242 = vpop.xlane.xlu0 %241
        %v243 = vsel %vm228, %v235, 0.0
        %244 = vadd.xlane.f32.xlu0 %v243
        %v245 = vpop.xlane.xlu0 %244
        %v246 = vsel %vm228, %v238, 0.0
        %247 = vadd.xlane.f32.xlu0 %v246
        %v248 = vpop.xlane.xlu0 %247
        %v249 = vsub.f32 %v240, %v245
        %v250 = vsub.f32 %v242, %v248
        %v251 = vlog2.pop %v240
        %v252 = vmul.f32 %v251, 0.6931472
        %v253 = vlog2.pop %v242
        %v254 = vmul.f32 %v253, 0.6931472
        %v255 = vmax.f32 %v245, 1e-30
        %v256 = vlog2.pop %v255
        %v257 = vmul.f32 %v256, 0.6931472
        %v258 = vmax.f32 %v248, 1e-30
        %v259 = vlog2.pop %v258
        %v260 = vmul.f32 %v259, 0.6931472
        %v261 = vmax.f32 %v249, 1e-30
        %v262 = vlog2.pop %v261
        %v263 = vmul.f32 %v262, 0.6931472
        %v264 = vmax.f32 %v250, 1e-30
        %v265 = vlog2.pop %v264
        %v266 = vmul.f32 %v265, 0.6931472
        %v267 = vrcp.pop %v242
        %v268 = vrcp.pop %v264
        %v269 = vsub.f32 %v260, %v257
        %v270 = vmul.f32 %v248, %v269
        %v271 = vsub.f32 %v266, %v263
        %v272 = vmul.f32 %v250, %v271
        %v273 = vadd.f32 %v270, %v272
        %v274 = vmul.f32 %v267, %v273
        %v275 = vsub.f32 %v252, %v254
        %v276 = vadd.f32 %v274, %v275
        %v277 = vsub.f32 %v221, %v220
        %v278 = vmul.f32 %v238, %v277
        %v279 = vsel %vm228, 0.0, %v278
        %280 = vadd.xlane.f32.xlu0 %v279
        %v281 = vpop.xlane.xlu0 %280
        %v282 = vsub.f32 %v230, %v232
        %v283 = vsub.f32 %v263, %v266
        %v284 = vadd.f32 %v282, %v283
        %v285 = vmul.f32 %v281, %v268
        %v286 = vadd.f32 %v285, %v284
        %s287 = smul.u32 %s20, 8
        %v288 = vlaneseq
        %v289 = vshrl.u32 %v288, 7
        %v290 = vstv %s287
        %v291 = vadd.s32 %v290, %v289
        %vm292 = vcmp.lt.s32.totalorder %v291, 16
        %v293 = vsel %vm292, %v276, 0.0
        %vm294 = vcmask 7168
        %v295 = vsel %vm294, %v293, 0.0
        %296 = vadd.xlane.f32.xlu0 %v295
        %v297 = vpop.xlane.xlu0 %296
        %v298 = vrot.slane %v297, 4
        %v299 = vadd.f32 %v297, %v298
        %v300 = vrot.slane %v299, 2
        %v301 = vadd.f32 %v299, %v300
        %v302 = vrot.slane %v301, 1
        %v303 = vadd.f32 %v301, %v302
        %s304 = vtos %v303
        %v305 = vsel %vm292, %v286, 0.0
        %v306 = vsel %vm294, %v305, 0.0
        %307 = vadd.xlane.f32.xlu0 %v306
        %v308 = vpop.xlane.xlu0 %307
        %v309 = vrot.slane %v308, 4
        %v310 = vadd.f32 %v308, %v309
        %v311 = vrot.slane %v310, 2
        %v312 = vadd.f32 %v310, %v311
        %v313 = vrot.slane %v312, 1
        %v314 = vadd.f32 %v312, %v313
        %s315 = vtos %v314
        %s316 = sadd.f32 %s304, %s315
        %v317 = vstv %s316
        %318 = vst [vmem:[%s211] sm:$0xff] %v317
        %s319 = sand.u32 %s106, 1
        %s320 = scalar_lea.sflag [#allocation4], %s319
        %s321 = sand.u32 %s106, 1
        %s322 = smul.addr %s321, 8
        %s323 = scalar_lea.vmem [#allocation5], %s322
        // Predicated region
        $region37: #{tpu_custom_call.1} parent=31 // pred_check
          %p324 = pneg %p116
        $region38: #{tpu_custom_call.1} parent=31 // pred_check_branch
          %326 = sbr.rel (%p324) target = $region40
        $region39: #{tpu_custom_call.1} parent=31 // pred_region
          %s328 = ssub.s32 128, 128
          %329 = vsyncadd %s320, %s328
          %s330 = smul.addr %s20, 128
          %s331 = scalar_lea.hbm %s3, %s330
          %s333 = sshll.u32 %s323, 4
          %s334 = int_to_ptr.vmem [resolvable:$true] %s333
          %336 = dma.vmem_to_hbm [thread:$0]  %s334, 128, %s331, %s320
        $region40: #{tpu_custom_call.1} parent=31 // pred_fallthru
          _
      $region32: #{tpu_custom_call.1} parent=5 // pred_fallthru
        _
      %p337 = scmp.le.s32.totalorder 2, %s15
      // Predicated region
      $region41: #{tpu_custom_call.1} parent=5 // pred_check
        %p338 = pneg %p337
      $region42: #{tpu_custom_call.1} parent=5 // pred_check_branch
        %340 = sbr.rel (%p338) target = $region44
      $region43: #{tpu_custom_call.1} parent=5 // pred_region
        %s341 = ssub.s32 %s15, 2
        // Predicated region
        $region45: #{tpu_custom_call.1} parent=43 // pred_check
          %p342 = pneg %p122
        $region46: #{tpu_custom_call.1} parent=43 // pred_check_branch
          %344 = sbr.rel (%p342) target = $region48
        $region47: #{tpu_custom_call.1} parent=43 // pred_region
          %s345 = sand.u32 %s107, 1
          %s346 = scalar_lea.sflag [#allocation4], %s345
          %s347 = sand.u32 %s107, 1
          %s348 = smul.addr %s347, 8
          %s349 = scalar_lea.vmem [#allocation5], %s348
          %350 = dma.done %s346, 128
        $region48: #{tpu_custom_call.1} parent=43 // pred_fallthru
          _
      $region44: #{tpu_custom_call.1} parent=5 // pred_fallthru
        _
    $region6: #{tpu_custom_call.1} parent=1 // loop_footer
      %s19 = sadd.s32 1, %s15
    $region7: #{tpu_custom_call.1} parent=1 // loop_footer_branch
      %14 = sbr.rel target = $region3
    $region8: #{tpu_custom_call.1} parent=1 // loop_exit
      _
    %351 = vsyncpa [#allocation3], 1
    %s352 = scalar_lea.sflag [#allocation3], 1
    %353 = vsyncpa %s352, 1
    %354 = vsyncpa [#allocation4], 1
    %s355 = scalar_lea.sflag [#allocation4], 1
    %356 = vsyncpa %s355, 1

</llo_original>
